<compile_context>
chip_gen: v5e
topology: v5e:2x2
jax: 0.10.0
libtpu: 0.0.40
codegen_flags: <defaults>
</compile_context>

<pallas_src>
import functools

import jax
import jax.numpy as jnp
from jax.experimental import pallas as pl
from jax.experimental.pallas import tpu as pltpu


def _attention_kernel(x_ref, ctx_ref, wq_ref, wkv_ref, wo_ref, bo_ref,
                      o_ref, oh_ref, *, nb, n, m, heads, dim_head, scale):
    """One grid step: `nb` batch elements, all heads.

    x_ref:   (nb*n, Dq)        queries input (batch folded into rows)
    ctx_ref: (nb*m, Dc)        context input
    wq_ref:  (Dq, inner)       bf16 fused q-projection weight
    wkv_ref: (Dc, 2*inner)     bf16 fused k/v-projection weight
    wo_ref:  (inner, Dq)       bf16 output-projection weight
    bo_ref:  (1, Dq)           f32 output bias
    o_ref:   (nb*n, Dq)        output
    oh_ref:  (nb*n, inner)     bf16 VMEM slab for per-head outputs ('b n (h d)')
    """
    inner = heads * dim_head

    # Activations -> bf16 for the MXU; accumulate in f32.
    x = x_ref[...].astype(jnp.bfloat16)          # (nb*n, Dq)
    ctx = ctx_ref[...].astype(jnp.bfloat16)      # (nb*m, Dc)

    # Fused, full-width projections: one MXU matmul for q (lanes = inner) and
    # one for k & v together (lanes = 2*inner).
    q = jnp.dot(x, wq_ref[...], preferred_element_type=jnp.float32)       # (nb*n, inner)
    kv = jnp.dot(ctx, wkv_ref[...], preferred_element_type=jnp.float32)   # (nb*m, 2*inner)

    # Fold the softmax scale into q (inner << m for realistic configs),
    # then cast the projected activations for the attention matmuls.
    q = (q * scale).astype(jnp.bfloat16)                                  # (nb*n, inner)
    k = kv[:, :inner].astype(jnp.bfloat16)                                # (nb*m, inner)
    v = kv[:, inner:].astype(jnp.bfloat16)                                # (nb*m, inner)

    # Per-head attention: static unroll (heads is small); heads are static
    # lane slices of the fused projections.
    # TODO(synk): switch to lax.fori_loop(..., unroll=True) if heads grows,
    # so vreg live ranges stay bounded.
    for h in range(heads):
        lo = h * dim_head
        q3 = q[:, lo:lo + dim_head].reshape(nb, n, dim_head)              # (nb,n,dh)
        k3 = k[:, lo:lo + dim_head].reshape(nb, m, dim_head)              # (nb,m,dh)
        v3 = v[:, lo:lo + dim_head].reshape(nb, m, dim_head)              # (nb,m,dh)

        # Attention scores, per-batch (scale already folded into q).
        sim = jnp.einsum('bnd,bmd->bnm', q3, k3,
                         preferred_element_type=jnp.float32)              # (nb,n,m) f32

        # Numerically-stable softmax in f32.
        sim = sim - jnp.max(sim, axis=-1, keepdims=True)
        p = jnp.exp(sim)
        attn = p * pl.reciprocal(jnp.sum(p, axis=-1, keepdims=True), approx=True)

        out_h = jnp.einsum('bnm,bmd->bnd', attn.astype(jnp.bfloat16), v3,
                           preferred_element_type=jnp.float32)            # (nb,n,dh)

        # Lane-offset pack into the (nb*n, inner) slab -> 'b n (h d)' layout.
        oh_ref[:, pl.ds(lo, dim_head)] = (
            out_h.reshape(nb * n, dim_head).astype(jnp.bfloat16))

    # Single head-concat output projection (K = inner) + bias.  Dropout(p=0)
    # is an identity in the forward pass.
    o_ref[...] = (jnp.dot(oh_ref[...], wo_ref[...],
                          preferred_element_type=jnp.float32)
                  + bo_ref[...]).astype(o_ref.dtype)


def cross_attention(x, context, wq, wkv, wo, bo, *, heads, dim_head, scale,
                    batch_block=None, vmem_limit_bytes=64 * 1024 * 1024):
    """x: (B, N, Dq); context: (B, M, Dc).

    wq: (Dq, inner), wkv: (Dc, 2*inner), wo: (inner, Dq), bo: (1, Dq)
    (torch nn.Linear weights pre-transposed to (in, out); to_kv kept fused).

    batch_block: batch elements per grid step.  Defaults to B (one grid step,
    minimal overhead).  On v7x pass batch_block = B // 2 so the "parallel"
    grid has >= 2 steps and shards across both TensorCores.
    """
    B, N, Dq = x.shape
    _, M, Dc = context.shape
    inner = heads * dim_head
    assert wq.shape == (Dq, inner)
    assert wkv.shape == (Dc, 2 * inner)
    assert wo.shape == (inner, Dq)

    if batch_block is None:
        batch_block = B
    assert B % batch_block == 0, "batch_block must divide B"
    num_blocks = B // batch_block
    if num_blocks > 1:
        # Non-full blocks must keep the sublane (8) alignment of block rows.
        assert (batch_block * N) % 8 == 0, "batch_block*N must be a multiple of 8"
        assert (batch_block * M) % 8 == 0, "batch_block*M must be a multiple of 8"
    # Layout-preserving row -> (batch, seq) splits inside the kernel.
    assert N % 8 == 0 and M % 8 == 0, "N and M must be multiples of 8"

    # --- parameter layout prep (wrapper-side, plain XLA) -------------------
    wq_b = wq.astype(jnp.bfloat16)        # (Dq, inner)
    wkv_b = wkv.astype(jnp.bfloat16)      # (Dc, 2*inner) fused k/v projection
    wo_b = wo.astype(jnp.bfloat16)        # (inner, Dq)
    bo2 = bo.reshape(1, Dq).astype(jnp.float32)

    # Fold batch into the row (sublane) axis.
    x2 = x.reshape(B * N, Dq)
    ctx2 = context.reshape(B * M, Dc)

    kernel = functools.partial(_attention_kernel,
                               nb=batch_block, n=N, m=M,
                               heads=heads, dim_head=dim_head, scale=scale)

    out = pl.pallas_call(
        kernel,
        out_shape=jax.ShapeDtypeStruct((B * N, Dq), x.dtype),
        grid_spec=pltpu.PrefetchScalarGridSpec(
            num_scalar_prefetch=0,
            grid=(num_blocks,),
            in_specs=[
                pl.BlockSpec((batch_block * N, Dq), lambda i: (i, 0)),     # x
                pl.BlockSpec((batch_block * M, Dc), lambda i: (i, 0)),     # context
                pl.BlockSpec((Dq, inner), lambda i: (0, 0)),               # wq (grid-invariant)
                pl.BlockSpec((Dc, 2 * inner), lambda i: (0, 0)),           # wkv (grid-invariant)
                pl.BlockSpec((inner, Dq), lambda i: (0, 0)),               # wo (grid-invariant)
                pl.BlockSpec((1, Dq), lambda i: (0, 0)),                   # bo (grid-invariant)
            ],
            out_specs=pl.BlockSpec((batch_block * N, Dq), lambda i: (i, 0)),
            scratch_shapes=[
                pltpu.VMEM((batch_block * N, inner), jnp.bfloat16),        # head-output slab
            ],
        ),
        compiler_params=pltpu.CompilerParams(
            dimension_semantics=("parallel",),
            vmem_limit_bytes=vmem_limit_bytes),
    )(x2, ctx2, wq_b, wkv_b, wo_b, bo2)

    return out.reshape(B, N, Dq)


def reference_attention(x, context, wq, wkv, wo, bo, *, heads, dim_head, scale):
    """Plain-JAX f32 reference mirroring the PyTorch forward."""
    B, N, Dq = x.shape
    inner = heads * dim_head
    q = x @ wq                                   # (B, N, inner)
    kv = context @ wkv                           # (B, M, 2*inner)
    k, v = kv[..., :inner], kv[..., inner:]

    def split_heads(t):
        b, n, _ = t.shape
        return t.reshape(b, n, heads, dim_head).transpose(0, 2, 1, 3)  # (B,H,n,dh)

    qh, kh, vh = map(split_heads, (q, k, v))
    sim = jnp.einsum('bhid,bhjd->bhij', qh, kh) * scale
    attn = jax.nn.softmax(sim, axis=-1)
    out = jnp.einsum('bhij,bhjd->bhid', attn, vh)          # (B, H, N, dh)
    out = out.transpose(0, 2, 1, 3).reshape(B, N, inner)   # 'b n (h d)'
    return out @ wo + bo


if __name__ == "__main__":
    # Module hyperparameters (small but consistent with the PyTorch module).
    query_dim = 32
    context_dim = 32
    heads = 2
    dim_head = 16
    inner_dim = heads * dim_head          # 32
    scale = dim_head ** (-0.5)
    # project_out = not (inner_dim == query_dim and heads == 1) -> True

    B, N, M = 2, 8, 8

    key = jax.random.PRNGKey(0)
    kx, kc, kq, kkv, kwo, kbo = jax.random.split(key, 6)
    x = jax.random.normal(kx, (B, N, query_dim), dtype=jnp.float32)
    context = jax.random.normal(kc, (B, M, context_dim), dtype=jnp.float32)

    # torch Linear weights are (out, in); store pre-transposed (in, out).
    wq = 0.02 * jax.random.normal(kq, (query_dim, inner_dim), dtype=jnp.float32)
    wkv = 0.02 * jax.random.normal(kkv, (context_dim, 2 * inner_dim), dtype=jnp.float32)
    wo = 0.02 * jax.random.normal(kwo, (inner_dim, query_dim), dtype=jnp.float32)
    bo = 0.02 * jax.random.normal(kbo, (1, query_dim), dtype=jnp.float32)

    out = cross_attention(x, context, wq, wkv, wo, bo,
                          heads=heads, dim_head=dim_head, scale=scale)
    out = jax.block_until_ready(out)

    ref = reference_attention(x, context, wq, wkv, wo, bo,
                              heads=heads, dim_head=dim_head, scale=scale)
    assert out.shape == (B, N, query_dim)
    # bf16 matmul operands + approx reciprocal in the kernel -> slightly looser
    # tolerance vs the f32 reference.
    assert jnp.allclose(out, ref, atol=2e-3, rtol=2e-2), "mismatch vs reference"

    print("KERNEL_OK")
</pallas_src>

<mosaic_0001>
module attributes {stable_mosaic.version = 11 : i64} {
  func.func @_attention_kernel(%arg0: i32, %arg1: memref<16x32xf32, #tpu.memory_space<vmem>>, %arg2: memref<16x32xf32, #tpu.memory_space<vmem>>, %arg3: memref<32x32xbf16, #tpu.memory_space<vmem>>, %arg4: memref<32x64xbf16, #tpu.memory_space<vmem>>, %arg5: memref<32x32xbf16, #tpu.memory_space<vmem>>, %arg6: memref<1x32xf32, #tpu.memory_space<vmem>>, %arg7: memref<16x32xf32, #tpu.memory_space<vmem>>, %arg8: memref<16x32xbf16, #tpu.memory_space<vmem>>) attributes {dimension_semantics = [#tpu.dimension_semantics<parallel>], iteration_bounds = array<i64: 1>, scalar_prefetch = 0 : i64, scratch_operands = 1 : i64, tpu.core_type = #tpu.core_type<tc>, window_params = [{transform_indices = @transform_0, window_bounds = array<i64: 16, 32>}, {transform_indices = @transform_1, window_bounds = array<i64: 16, 32>}, {pipeline_mode = #tpu.pipeline_mode<synchronous>, transform_indices = @transform_2, window_bounds = array<i64: 32, 32>}, {pipeline_mode = #tpu.pipeline_mode<synchronous>, transform_indices = @transform_3, window_bounds = array<i64: 32, 64>}, {pipeline_mode = #tpu.pipeline_mode<synchronous>, transform_indices = @transform_4, window_bounds = array<i64: 32, 32>}, {pipeline_mode = #tpu.pipeline_mode<synchronous>, transform_indices = @transform_5, window_bounds = array<i64: 1, 32>}, {transform_indices = @transform_6, window_bounds = array<i64: 16, 32>}]} {
    %c0 = arith.constant 0 : index
    %c0_0 = arith.constant 0 : index
    %0 = vector.load %arg1[%c0, %c0_0] : memref<16x32xf32, #tpu.memory_space<vmem>>, vector<16x32xf32>
    %1 = arith.truncf %0 : vector<16x32xf32> to vector<16x32xbf16>
    %c0_1 = arith.constant 0 : index
    %c0_2 = arith.constant 0 : index
    %2 = vector.load %arg2[%c0_1, %c0_2] : memref<16x32xf32, #tpu.memory_space<vmem>>, vector<16x32xf32>
    %3 = arith.truncf %2 : vector<16x32xf32> to vector<16x32xbf16>
    %c0_3 = arith.constant 0 : index
    %c0_4 = arith.constant 0 : index
    %4 = vector.load %arg3[%c0_3, %c0_4] : memref<32x32xbf16, #tpu.memory_space<vmem>>, vector<32x32xbf16>
    %cst = arith.constant dense<0.000000e+00> : vector<16x32xf32>
    %5 = tpu.matmul %1, %4, %cst {dimension_numbers = #tpu.dot_dimension_numbers<[1], [0], [0], [1], [0, 0, 1, 1], [], []>} : vector<16x32xbf16>, vector<32x32xbf16>, vector<16x32xf32> -> vector<16x32xf32>
    %c0_5 = arith.constant 0 : index
    %c0_6 = arith.constant 0 : index
    %6 = vector.load %arg4[%c0_5, %c0_6] : memref<32x64xbf16, #tpu.memory_space<vmem>>, vector<32x64xbf16>
    %cst_7 = arith.constant dense<0.000000e+00> : vector<16x64xf32>
    %7 = tpu.matmul %3, %6, %cst_7 {dimension_numbers = #tpu.dot_dimension_numbers<[1], [0], [0], [1], [0, 0, 1, 1], [], []>} : vector<16x32xbf16>, vector<32x64xbf16>, vector<16x64xf32> -> vector<16x64xf32>
    %cst_8 = arith.constant 2.500000e-01 : f32
    %8 = vector.broadcast %cst_8 : f32 to vector<16x32xf32>
    %9 = arith.mulf %5, %8 : vector<16x32xf32>
    %10 = arith.truncf %9 : vector<16x32xf32> to vector<16x32xbf16>
    %11 = vector.extract_strided_slice %7 {offsets = [0, 0], sizes = [16, 32], strides = [1, 1]} : vector<16x64xf32> to vector<16x32xf32>
    %12 = arith.truncf %11 : vector<16x32xf32> to vector<16x32xbf16>
    %13 = vector.extract_strided_slice %7 {offsets = [0, 32], sizes = [16, 32], strides = [1, 1]} : vector<16x64xf32> to vector<16x32xf32>
    %14 = arith.truncf %13 : vector<16x32xf32> to vector<16x32xbf16>
    %15 = vector.extract_strided_slice %10 {offsets = [0, 0], sizes = [16, 16], strides = [1, 1]} : vector<16x32xbf16> to vector<16x16xbf16>
    %16 = vector.shape_cast %15 : vector<16x16xbf16> to vector<2x8x16xbf16>
    %17 = vector.extract_strided_slice %12 {offsets = [0, 0], sizes = [16, 16], strides = [1, 1]} : vector<16x32xbf16> to vector<16x16xbf16>
    %18 = vector.shape_cast %17 : vector<16x16xbf16> to vector<2x8x16xbf16>
    %19 = vector.extract_strided_slice %14 {offsets = [0, 0], sizes = [16, 16], strides = [1, 1]} : vector<16x32xbf16> to vector<16x16xbf16>
    %20 = vector.shape_cast %19 : vector<16x16xbf16> to vector<2x8x16xbf16>
    "tpu.trace_start"() <{level = 10 : i32, message = "bnd,bmd->bnm"}> : () -> ()
    %cst_9 = arith.constant dense<0.000000e+00> : vector<2x8x8xf32>
    %21 = tpu.matmul %16, %18, %cst_9 {dimension_numbers = #tpu.dot_dimension_numbers<[2], [2], [1], [1], [0, 0, 0, 1, 1, 1], [0], [0]>} : vector<2x8x16xbf16>, vector<2x8x16xbf16>, vector<2x8x8xf32> -> vector<2x8x8xf32>
    "tpu.trace_stop"() : () -> ()
    %cst_10 = arith.constant dense<0xFF800000> : vector<2x8xf32>
    %22 = vector.multi_reduction <maximumf>, %21, %cst_10 [2] : vector<2x8x8xf32> to vector<2x8xf32>
    %23 = vector.shape_cast %22 : vector<2x8xf32> to vector<2x8x1xf32>
    %24 = vector.broadcast %23 : vector<2x8x1xf32> to vector<2x8x8xf32>
    %25 = arith.subf %21, %24 : vector<2x8x8xf32>
    %26 = math.exp %25 : vector<2x8x8xf32>
    %cst_11 = arith.constant dense<0.000000e+00> : vector<2x8xf32>
    %27 = vector.multi_reduction <add>, %26, %cst_11 [2] : vector<2x8x8xf32> to vector<2x8xf32>
    %28 = vector.shape_cast %27 : vector<2x8xf32> to vector<2x8x1xf32>
    %29 = tpu.reciprocal %28 {approx = true} : vector<2x8x1xf32> -> vector<2x8x1xf32>
    %30 = vector.broadcast %29 : vector<2x8x1xf32> to vector<2x8x8xf32>
    %31 = arith.mulf %26, %30 : vector<2x8x8xf32>
    %32 = arith.truncf %31 : vector<2x8x8xf32> to vector<2x8x8xbf16>
    "tpu.trace_start"() <{level = 10 : i32, message = "bnm,bmd->bnd"}> : () -> ()
    %cst_12 = arith.constant dense<0.000000e+00> : vector<2x8x16xf32>
    %33 = tpu.matmul %32, %20, %cst_12 {dimension_numbers = #tpu.dot_dimension_numbers<[2], [1], [1], [2], [0, 0, 0, 1, 1, 2], [0], [0]>} : vector<2x8x8xbf16>, vector<2x8x16xbf16>, vector<2x8x16xf32> -> vector<2x8x16xf32>
    "tpu.trace_stop"() : () -> ()
    %34 = vector.shape_cast %33 : vector<2x8x16xf32> to vector<16x16xf32>
    %35 = arith.truncf %34 : vector<16x16xf32> to vector<16x16xbf16>
    %c0_13 = arith.constant 0 : index
    %c0_14 = arith.constant 0 : index
    %36 = vector.load %arg8[%c0_13, %c0_14] : memref<16x32xbf16, #tpu.memory_space<vmem>>, vector<16x16xbf16>
    tpu.vector_store %arg8[%c0_13, %c0_14], %35 {strides = array<i32>} : memref<16x32xbf16, #tpu.memory_space<vmem>>, vector<16x16xbf16>,
    %37 = vector.extract_strided_slice %10 {offsets = [0, 16], sizes = [16, 16], strides = [1, 1]} : vector<16x32xbf16> to vector<16x16xbf16>
    %38 = vector.shape_cast %37 : vector<16x16xbf16> to vector<2x8x16xbf16>
    %39 = vector.extract_strided_slice %12 {offsets = [0, 16], sizes = [16, 16], strides = [1, 1]} : vector<16x32xbf16> to vector<16x16xbf16>
    %40 = vector.shape_cast %39 : vector<16x16xbf16> to vector<2x8x16xbf16>
    %41 = vector.extract_strided_slice %14 {offsets = [0, 16], sizes = [16, 16], strides = [1, 1]} : vector<16x32xbf16> to vector<16x16xbf16>
    %42 = vector.shape_cast %41 : vector<16x16xbf16> to vector<2x8x16xbf16>
    "tpu.trace_start"() <{level = 10 : i32, message = "bnd,bmd->bnm"}> : () -> ()
    %cst_15 = arith.constant dense<0.000000e+00> : vector<2x8x8xf32>
    %43 = tpu.matmul %38, %40, %cst_15 {dimension_numbers = #tpu.dot_dimension_numbers<[2], [2], [1], [1], [0, 0, 0, 1, 1, 1], [0], [0]>} : vector<2x8x16xbf16>, vector<2x8x16xbf16>, vector<2x8x8xf32> -> vector<2x8x8xf32>
    "tpu.trace_stop"() : () -> ()
    %cst_16 = arith.constant dense<0xFF800000> : vector<2x8xf32>
    %44 = vector.multi_reduction <maximumf>, %43, %cst_16 [2] : vector<2x8x8xf32> to vector<2x8xf32>
    %45 = vector.shape_cast %44 : vector<2x8xf32> to vector<2x8x1xf32>
    %46 = vector.broadcast %45 : vector<2x8x1xf32> to vector<2x8x8xf32>
    %47 = arith.subf %43, %46 : vector<2x8x8xf32>
    %48 = math.exp %47 : vector<2x8x8xf32>
    %cst_17 = arith.constant dense<0.000000e+00> : vector<2x8xf32>
    %49 = vector.multi_reduction <add>, %48, %cst_17 [2] : vector<2x8x8xf32> to vector<2x8xf32>
    %50 = vector.shape_cast %49 : vector<2x8xf32> to vector<2x8x1xf32>
    %51 = tpu.reciprocal %50 {approx = true} : vector<2x8x1xf32> -> vector<2x8x1xf32>
    %52 = vector.broadcast %51 : vector<2x8x1xf32> to vector<2x8x8xf32>
    %53 = arith.mulf %48, %52 : vector<2x8x8xf32>
    %54 = arith.truncf %53 : vector<2x8x8xf32> to vector<2x8x8xbf16>
    "tpu.trace_start"() <{level = 10 : i32, message = "bnm,bmd->bnd"}> : () -> ()
    %cst_18 = arith.constant dense<0.000000e+00> : vector<2x8x16xf32>
    %55 = tpu.matmul %54, %42, %cst_18 {dimension_numbers = #tpu.dot_dimension_numbers<[2], [1], [1], [2], [0, 0, 0, 1, 1, 2], [0], [0]>} : vector<2x8x8xbf16>, vector<2x8x16xbf16>, vector<2x8x16xf32> -> vector<2x8x16xf32>
    "tpu.trace_stop"() : () -> ()
    %56 = vector.shape_cast %55 : vector<2x8x16xf32> to vector<16x16xf32>
    %57 = arith.truncf %56 : vector<16x16xf32> to vector<16x16xbf16>
    %c0_19 = arith.constant 0 : index
    %c16 = arith.constant 16 : index
    %58 = vector.load %arg8[%c0_19, %c16] : memref<16x32xbf16, #tpu.memory_space<vmem>>, vector<16x16xbf16>
    tpu.vector_store %arg8[%c0_19, %c16], %57 {strides = array<i32>} : memref<16x32xbf16, #tpu.memory_space<vmem>>, vector<16x16xbf16>,
    %c0_20 = arith.constant 0 : index
    %c0_21 = arith.constant 0 : index
    %59 = vector.load %arg8[%c0_20, %c0_21] : memref<16x32xbf16, #tpu.memory_space<vmem>>, vector<16x32xbf16>
    %c0_22 = arith.constant 0 : index
    %c0_23 = arith.constant 0 : index
    %60 = vector.load %arg5[%c0_22, %c0_23] : memref<32x32xbf16, #tpu.memory_space<vmem>>, vector<32x32xbf16>
    %cst_24 = arith.constant dense<0.000000e+00> : vector<16x32xf32>
    %61 = tpu.matmul %59, %60, %cst_24 {dimension_numbers = #tpu.dot_dimension_numbers<[1], [0], [0], [1], [0, 0, 1, 1], [], []>} : vector<16x32xbf16>, vector<32x32xbf16>, vector<16x32xf32> -> vector<16x32xf32>
    %c0_25 = arith.constant 0 : index
    %c0_26 = arith.constant 0 : index
    %62 = vector.load %arg6[%c0_25, %c0_26] : memref<1x32xf32, #tpu.memory_space<vmem>>, vector<1x32xf32>
    %63 = vector.broadcast %62 : vector<1x32xf32> to vector<16x32xf32>
    %64 = arith.addf %61, %63 : vector<16x32xf32>
    %c0_27 = arith.constant 0 : index
    %c0_28 = arith.constant 0 : index
    %65 = vector.load %arg7[%c0_27, %c0_28] : memref<16x32xf32, #tpu.memory_space<vmem>>, vector<16x32xf32>
    tpu.vector_store %arg7[%c0_27, %c0_28], %64 {strides = array<i32>} : memref<16x32xf32, #tpu.memory_space<vmem>>, vector<16x32xf32>,
    return
  }
  func.func @transform_0(%arg0: i32) -> (i32, i32) {
    %c0_i32 = arith.constant 0 : i32
    %c0_i32_0 = arith.constant 0 : i32
    return %arg0, %c0_i32 : i32, i32
  }
  func.func @transform_1(%arg0: i32) -> (i32, i32) {
    %c0_i32 = arith.constant 0 : i32
    %c0_i32_0 = arith.constant 0 : i32
    return %arg0, %c0_i32 : i32, i32
  }
  func.func @transform_2(%arg0: i32) -> (i32, i32) {
    %c0_i32 = arith.constant 0 : i32
    %c0_i32_0 = arith.constant 0 : i32
    %c0_i32_1 = arith.constant 0 : i32
    return %c0_i32, %c0_i32_0 : i32, i32
  }
  func.func @transform_3(%arg0: i32) -> (i32, i32) {
    %c0_i32 = arith.constant 0 : i32
    %c0_i32_0 = arith.constant 0 : i32
    %c0_i32_1 = arith.constant 0 : i32
    return %c0_i32, %c0_i32_0 : i32, i32
  }
  func.func @transform_4(%arg0: i32) -> (i32, i32) {
    %c0_i32 = arith.constant 0 : i32
    %c0_i32_0 = arith.constant 0 : i32
    %c0_i32_1 = arith.constant 0 : i32
    return %c0_i32, %c0_i32_0 : i32, i32
  }
  func.func @transform_5(%arg0: i32) -> (i32, i32) {
    %c0_i32 = arith.constant 0 : i32
    %c0_i32_0 = arith.constant 0 : i32
    %c0_i32_1 = arith.constant 0 : i32
    return %c0_i32, %c0_i32_0 : i32, i32
  }
  func.func @transform_6(%arg0: i32) -> (i32, i32) {
    %c0_i32 = arith.constant 0 : i32
    %c0_i32_0 = arith.constant 0 : i32
    return %arg0, %c0_i32 : i32, i32
  }
}

</mosaic_0001>

<llo_original>
// kernel: tpu_custom_call.1
$region0: #{tpu_custom_call.1}
  #allocation0 [shape = 'u32[]', space=smem, size = 0x4, offset = 0x4, fixed_abs, tag = 'smem constant byte address 0x4 - core index']
  #allocation1 [shape = 'u32[72,128]{1,0:T(1,128)}', space=vmem, size = 0x9000, scoped, tag = 'internal scratch']
  #allocation2 [shape = 'bf16[16,32]{1,0:T(8,128)(2,1)}', space=vmem, size = 0x1000, scoped, tag = 'scratch operand']
  %s0 = inlined_call_operand.hbm [shape: f32[16,32], index: 0, kind: input, shape index: {}]
  %s1 = inlined_call_operand.hbm [shape: f32[16,32], index: 1, kind: input, shape index: {}]
  %s2 = inlined_call_operand.hbm [shape: bf16[32,32], index: 2, kind: input, shape index: {}]
  %s3 = inlined_call_operand.hbm [shape: bf16[32,64], index: 3, kind: input, shape index: {}]
  %s4 = inlined_call_operand.hbm [shape: bf16[32,32], index: 4, kind: input, shape index: {}]
  %s5 = inlined_call_operand.vmem [shape: f32[1,32], index: 5, kind: input, shape index: {}]
  %s6 = inlined_call_operand.hbm [shape: f32[16,32], index: 6, kind: output, shape index: {}]
  %s7 = sld [smem:[#allocation0]]
  $region54: #{tpu_custom_call.1} parent=0
    _
  %s9 = ssub.s32 1, %s7
  %s10 = scalar_select 0, %s9, %s7
  $region1: #{tpu_custom_call.1} parent=0
    #allocation3 [shape = 'u8[8192]{0}', space=vmem, size = 0x2000, scoped, tag = 'input window, operand 0, single buffered']
    #allocation4 [shape = 's32[1]{0}', space=sflag, size = 0x4, scoped, tag = 'scoped memory for tpu_custom_call.1']
    #allocation5 [shape = 's32[1]{0}', space=sflag, size = 0x4, scoped, tag = 'scoped memory for tpu_custom_call.1']
    #allocation6 [shape = 'u8[8192]{0}', space=vmem, size = 0x2000, scoped, tag = 'input window, operand 1, single buffered']
    #allocation7 [shape = 's32[1]{0}', space=sflag, size = 0x4, scoped, tag = 'scoped memory for tpu_custom_call.1']
    #allocation8 [shape = 'u8[8192]{0}', space=vmem, size = 0x2000, scoped, tag = 'input window, operand 2, single buffered']
    #allocation9 [shape = 'u8[8192]{0}', space=vmem, size = 0x2000, scoped, tag = 'input window, operand 3, single buffered']
    #allocation10 [shape = 's32[1]{0}', space=sflag, size = 0x4, scoped, tag = 'scoped memory for tpu_custom_call.1']
    #allocation11 [shape = 'u8[8192]{0}', space=vmem, size = 0x2000, scoped, tag = 'input window, operand 4, single buffered']
    #allocation12 [shape = 'u8[8192]{0}', space=vmem, size = 0x2000, scoped, tag = 'output window, operand 0, single buffered']
    %11 = vsyncpa [#allocation4], 0
    %12 = vsyncpa [#allocation7], 0
    %13 = vsyncpa [#allocation10], 0
    %14 = vsyncpa [#allocation5], 0
    // Predicated region
    $region2: #{tpu_custom_call.1} parent=1 // pred_check
      _
    $region3: #{tpu_custom_call.1} parent=1 // pred_check_branch
      %16 = sbr.rel (0) target = $region5
    $region4: #{tpu_custom_call.1} parent=1 // pred_region
      %18 = vsyncadd [#allocation4], 0
      %s19 = sshll.u32 %s0, 4
      %s20 = int_to_ptr.hbm [resolvable:$true] %s19
      %s21 = sshll.u32 [#allocation3], 4
      %s22 = int_to_ptr.vmem [resolvable:$true] %s21
      %27 = dma.hbm_to_vmem [thread:$0]  %s20, 256, %s22, [#allocation4], 128, 128, 8
    $region5: #{tpu_custom_call.1} parent=1 // pred_fallthru
      _
    // Predicated region
    $region6: #{tpu_custom_call.1} parent=1 // pred_check
      _
    $region7: #{tpu_custom_call.1} parent=1 // pred_check_branch
      %29 = sbr.rel (0) target = $region9
    $region8: #{tpu_custom_call.1} parent=1 // pred_region
      %31 = vsyncadd [#allocation7], 0
      %s32 = sshll.u32 %s1, 4
      %s33 = int_to_ptr.hbm [resolvable:$true] %s32
      %s34 = sshll.u32 [#allocation6], 4
      %s35 = int_to_ptr.vmem [resolvable:$true] %s34
      %40 = dma.hbm_to_vmem [thread:$0]  %s33, 256, %s35, [#allocation7], 128, 128, 8
    $region9: #{tpu_custom_call.1} parent=1 // pred_fallthru
      _
    // Predicated region
    $region10: #{tpu_custom_call.1} parent=1 // pred_check
      _
    $region11: #{tpu_custom_call.1} parent=1 // pred_check_branch
      %42 = sbr.rel (0) target = $region13
    $region12: #{tpu_custom_call.1} parent=1 // pred_region
      %44 = vsyncadd [#allocation7], 0
      %s45 = sshll.u32 %s2, 4
      %s46 = int_to_ptr.hbm [resolvable:$true] %s45
      %s47 = sshll.u32 [#allocation8], 4
      %s48 = int_to_ptr.vmem [resolvable:$true] %s47
      %53 = dma.hbm_to_vmem [thread:$0]  %s46, 256, %s48, [#allocation7], 64, 64, 4
    $region13: #{tpu_custom_call.1} parent=1 // pred_fallthru
      _
    // Predicated region
    $region14: #{tpu_custom_call.1} parent=1 // pred_check
      _
    $region15: #{tpu_custom_call.1} parent=1 // pred_check_branch
      %55 = sbr.rel (0) target = $region17
    $region16: #{tpu_custom_call.1} parent=1 // pred_region
      %57 = vsyncadd [#allocation10], 0
      %s58 = sshll.u32 %s3, 4
      %s59 = int_to_ptr.hbm [resolvable:$true] %s58
      %s60 = sshll.u32 [#allocation9], 4
      %s61 = int_to_ptr.vmem [resolvable:$true] %s60
      %66 = dma.hbm_to_vmem [thread:$0]  %s59, 256, %s61, [#allocation10], 64, 64, 4
    $region17: #{tpu_custom_call.1} parent=1 // pred_fallthru
      _
    // Predicated region
    $region18: #{tpu_custom_call.1} parent=1 // pred_check
      _
    $region19: #{tpu_custom_call.1} parent=1 // pred_check_branch
      %68 = sbr.rel (0) target = $region21
    $region20: #{tpu_custom_call.1} parent=1 // pred_region
      %70 = vsyncadd [#allocation10], 0
      %s71 = sshll.u32 %s4, 4
      %s72 = int_to_ptr.hbm [resolvable:$true] %s71
      %s73 = sshll.u32 [#allocation11], 4
      %s74 = int_to_ptr.vmem [resolvable:$true] %s73
      %79 = dma.hbm_to_vmem [thread:$0]  %s72, 256, %s74, [#allocation10], 64, 64, 4
    $region21: #{tpu_custom_call.1} parent=1 // pred_fallthru
      _
    // Predicated region
    $region22: #{tpu_custom_call.1} parent=1 // pred_check
      _
    $region23: #{tpu_custom_call.1} parent=1 // pred_check_branch
      %81 = sbr.rel (0) target = $region25
    $region24: #{tpu_custom_call.1} parent=1 // pred_region
      _
    $region25: #{tpu_custom_call.1} parent=1 // pred_fallthru
      _
    // Predicated region
    $region26: #{tpu_custom_call.1} parent=1 // pred_check
      _
    $region27: #{tpu_custom_call.1} parent=1 // pred_check_branch
      %83 = sbr.rel (0) target = $region29
    $region28: #{tpu_custom_call.1} parent=1 // pred_region
      %85 = dma.done [#allocation4], 256
    $region29: #{tpu_custom_call.1} parent=1 // pred_fallthru
      _
    // Predicated region
    $region30: #{tpu_custom_call.1} parent=1 // pred_check
      _
    $region31: #{tpu_custom_call.1} parent=1 // pred_check_branch
      %87 = sbr.rel (0) target = $region33
    $region32: #{tpu_custom_call.1} parent=1 // pred_region
      %89 = dma.done [#allocation7], 256
    $region33: #{tpu_custom_call.1} parent=1 // pred_fallthru
      _
    // Predicated region
    $region34: #{tpu_custom_call.1} parent=1 // pred_check
      _
    $region35: #{tpu_custom_call.1} parent=1 // pred_check_branch
      %91 = sbr.rel (0) target = $region37
    $region36: #{tpu_custom_call.1} parent=1 // pred_region
      %93 = dma.done [#allocation7], 256
    $region37: #{tpu_custom_call.1} parent=1 // pred_fallthru
      _
    // Predicated region
    $region38: #{tpu_custom_call.1} parent=1 // pred_check
      _
    $region39: #{tpu_custom_call.1} parent=1 // pred_check_branch
      %95 = sbr.rel (0) target = $region41
    $region40: #{tpu_custom_call.1} parent=1 // pred_region
      %97 = dma.done [#allocation10], 256
    $region41: #{tpu_custom_call.1} parent=1 // pred_fallthru
      _
    // Predicated region
    $region42: #{tpu_custom_call.1} parent=1 // pred_check
      _
    $region43: #{tpu_custom_call.1} parent=1 // pred_check_branch
      %99 = sbr.rel (0) target = $region45
    $region44: #{tpu_custom_call.1} parent=1 // pred_region
      %101 = dma.done [#allocation10], 256
    $region45: #{tpu_custom_call.1} parent=1 // pred_fallthru
      _
    %v103 = vld [vmem:[#allocation3] sm:$0xff]
    %v104 = vld [vmem:[#allocation3 + $0x8] sm:$0xff]
    %v105 = vpack.c.bf16 %v104, %v103
    %v106 = vld [vmem:[#allocation6] sm:$0xff]
    %v107 = vld [vmem:[#allocation6 + $0x8] sm:$0xff]
    %v108 = vpack.c.bf16 %v107, %v106
    %v109 = vld [vmem:[#allocation8] sm:$0xf]
    %v110 = vld [vmem:[#allocation8 + $0x4] sm:$0xf]
    %v111 = vld [vmem:[#allocation8 + $0x8] sm:$0xf]
    %v112 = vld [vmem:[#allocation8 + $0xc] sm:$0xf]
    %v117 = vunpack.c.l.b16 %v109
    %v118 = vunpack.c.l.b16 %v110
    %v119 = vunpack.c.l.b16 %v111
    %v120 = vunpack.c.l.b16 %v112
    %v121 = vpack.c.b16 %v118, %v117
    %v122 = vpack.c.b16 %v120, %v119
    %vm125 = vcmask 261120
    %v127 = vsel %vm125, %v105, 0
    %129 = vmatpush.bf16.msra.mxu0 0
    %130 = vmatpush.bf16.msra.mxu0 0
    %131 = vmatpush.bf16.msra.mxu0 0
    %132 = vmatpush.bf16.msra.mxu0 0
    %133 = vmatpush.bf16.msra.mxu0 0
    %134 = vmatpush.bf16.msra.mxu0 0
    %135 = vmatpush.bf16.msra.mxu0 %v122
    %136 = vmatpush.bf16.msra.mxu0 %v121
    %137 = vmatmul.bf16.gmra.mxu0 %v127
    %v138 = vpop.f32.mrf.mxu0
    %v139 = vadd.f32 0.0, %v138
    %v140 = vpop.f32.mrf.mxu0
    %v141 = vadd.f32 0.0, %v140
    %142 = vdwg.mxu0
    %v143 = vld [vmem:[#allocation9] sm:$0xf]
    %v144 = vld [vmem:[#allocation9 + $0x4] sm:$0xf]
    %v145 = vld [vmem:[#allocation9 + $0x8] sm:$0xf]
    %v146 = vld [vmem:[#allocation9 + $0xc] sm:$0xf]
    %v151 = vunpack.c.l.b16 %v143
    %v152 = vunpack.c.l.b16 %v144
    %v153 = vunpack.c.l.b16 %v145
    %v154 = vunpack.c.l.b16 %v146
    %v155 = vpack.c.b16 %v152, %v151
    %v156 = vpack.c.b16 %v154, %v153
    %v160 = vsel %vm125, %v108, 0
    %162 = vmatpush.bf16.msra.mxu0 0
    %163 = vmatpush.bf16.msra.mxu0 0
    %164 = vmatpush.bf16.msra.mxu0 0
    %165 = vmatpush.bf16.msra.mxu0 0
    %166 = vmatpush.bf16.msra.mxu0 0
    %167 = vmatpush.bf16.msra.mxu0 0
    %168 = vmatpush.bf16.msra.mxu0 %v156
    %169 = vmatpush.bf16.msra.mxu0 %v155
    %170 = vmatmul.bf16.gmra.mxu0 %v160
    %v171 = vpop.f32.mrf.mxu0
    %v172 = vadd.f32 0.0, %v171
    %v173 = vpop.f32.mrf.mxu0
    %v174 = vadd.f32 0.0, %v173
    %175 = vdwg.mxu0
    %v176 = vmul.f32 %v139, 0.25
    %v177 = vmul.f32 %v141, 0.25
    %v178 = vpack.c.bf16 %v176, %v176
    %v179 = vpack.c.bf16 %v177, %v177
    %v180 = vpack.c.bf16 %v172, %v172
    %v181 = vpack.c.bf16 %v174, %v174
    %vm182 = vcmask 130048
    %v184 = vsel %vm182, %v178, 0
    %v187 = vsel %vm182, %v180, 0
    %189 = vmatpush.bf16.xpose.msra.mxu0 0
    %190 = vmatpush.bf16.xpose.msra.mxu0 0
    %191 = vmatpush.bf16.xpose.msra.mxu0 0
    %192 = vmatpush.bf16.xpose.msra.mxu0 0
    %193 = vmatpush.bf16.xpose.msra.mxu0 0
    %194 = vmatpush.bf16.xpose.msra.mxu0 0
    %195 = vmatpush.bf16.xpose.msra.mxu0 0
    %196 = vmatpush.bf16.xpose.msra.mxu0 %v187
    %197 = vmatmul.bf16.gmra.mxu0 %v184
    %v198 = vpop.f32.mrf.mxu0
    %v199 = vadd.f32 0.0, %v198
    %v200 = vpop.f32.mrf.mxu0
    %201 = vdwg.mxu0
    %v203 = vsel %vm182, %v179, 0
    %v206 = vsel %vm182, %v181, 0
    %208 = vmatpush.bf16.xpose.msra.mxu0 0
    %209 = vmatpush.bf16.xpose.msra.mxu0 0
    %210 = vmatpush.bf16.xpose.msra.mxu0 0
    %211 = vmatpush.bf16.xpose.msra.mxu0 0
    %212 = vmatpush.bf16.xpose.msra.mxu0 0
    %213 = vmatpush.bf16.xpose.msra.mxu0 0
    %214 = vmatpush.bf16.xpose.msra.mxu0 0
    %215 = vmatpush.bf16.xpose.msra.mxu0 %v206
    %216 = vmatmul.bf16.gmra.mxu0 %v203
    %v217 = vpop.f32.mrf.mxu0
    %v218 = vadd.f32 0.0, %v217
    %v219 = vpop.f32.mrf.mxu0
    %220 = vdwg.mxu0
    %vm221 = vcmask 64512
    %v222 = vsel %vm221, %v199, -inf
    %223 = vmax.xlane.f32.xlu0 %v222
    %v224 = vpop.xlane.xlu0 %223
    %v225 = vsel %vm221, %v218, -inf
    %226 = vmax.xlane.f32.xlu0 %v225
    %v227 = vpop.xlane.xlu0 %226
    %v228 = vsub.f32 %v199, %v224
    %v229 = vsub.f32 %v218, %v227
    %v230 = vmul.f32 %v228, 1.442695
    %v231 = vpow.pop %v230
    %v232 = vmul.f32 %v229, 1.442695
    %v233 = vpow.pop %v232
    %v234 = vsel %vm221, %v231, 0.0
    %235 = vadd.xlane.f32.xlu0 %v234
    %v236 = vpop.xlane.xlu0 %235
    %v237 = vsel %vm221, %v233, 0.0
    %238 = vadd.xlane.f32.xlu0 %v237
    %v239 = vpop.xlane.xlu0 %238
    %v240 = vrcp.pop %v236
    %v241 = vrcp.pop %v239
    %v242 = vmul.f32 %v231, %v240
    %v243 = vmul.f32 %v233, %v241
    %v244 = vpack.c.bf16 %v242, %v242
    %v245 = vpack.c.bf16 %v243, %v243
    %v247 = vunpack.c.l.b16 %v180
    %v248 = vpack.c.b16 %v247, %v247
    %249 = vrot.lane.b32.xlu0 %v248, 96
    %v250 = vpop.permute.xlu0 %249
    %v252 = vsel %vm221, %v244, 0
    %vm254 = vcmask 1043456
    %v256 = vsel %vm254, %v250, 0
    %258 = vmatpush.bf16.msra.mxu0 0
    %259 = vmatpush.bf16.msra.mxu0 0
    %260 = vmatpush.bf16.msra.mxu0 0
    %261 = vmatpush.bf16.msra.mxu0 0
    %262 = vmatpush.bf16.msra.mxu0 0
    %263 = vmatpush.bf16.msra.mxu0 0
    %264 = vmatpush.bf16.msra.mxu0 0
    %265 = vmatpush.bf16.msra.mxu0 %v256
    %266 = vmatmul.bf16.gmra.mxu0 %v252
    %v267 = vpop.f32.mrf.mxu0
    %v268 = vadd.f32 0.0, %v267
    %v269 = vpop.f32.mrf.mxu0
    %270 = vdwg.mxu0
    %v272 = vunpack.c.l.b16 %v181
    %v273 = vpack.c.b16 %v272, %v272
    %274 = vrot.lane.b32.xlu0 %v273, 96
    %v275 = vpop.permute.xlu0 %274
    %v277 = vsel %vm221, %v245, 0
    %v280 = vsel %vm254, %v275, 0
    %282 = vmatpush.bf16.msra.mxu0 0
    %283 = vmatpush.bf16.msra.mxu0 0
    %284 = vmatpush.bf16.msra.mxu0 0
    %285 = vmatpush.bf16.msra.mxu0 0
    %286 = vmatpush.bf16.msra.mxu0 0
    %287 = vmatpush.bf16.msra.mxu0 0
    %288 = vmatpush.bf16.msra.mxu0 0
    %289 = vmatpush.bf16.msra.mxu0 %v280
    %290 = vmatmul.bf16.gmra.mxu0 %v277
    %v291 = vpop.f32.mrf.mxu0
    %v292 = vadd.f32 0.0, %v291
    %v293 = vpop.f32.mrf.mxu0
    %294 = vdwg.mxu0
    %v295 = vpack.c.bf16 %v268, %v268
    %v296 = vpack.c.bf16 %v292, %v292
    %vm297 = vcmask 125952
    %298 = vst.msk [vmem:[#allocation2] sm:$0xf] %vm297, %v295
    %299 = vst.msk [vmem:[#allocation2 + $0x4] sm:$0xf] %vm297, %v296
    %v301 = vunpack.c.l.b16 %v178
    %v302 = vpack.c.b16 %v301, %v301
    %303 = vrot.lane.b32.xlu0 %v302, 112
    %v304 = vpop.permute.xlu0 %303
    %305 = vrot.lane.b32.xlu0 %v248, 112
    %v306 = vpop.permute.xlu0 %305
    %v308 = vsel %vm182, %v304, 0
    %v311 = vsel %vm182, %v306, 0
    %313 = vmatpush.bf16.xpose.msra.mxu0 0
    %314 = vmatpush.bf16.xpose.msra.mxu0 0
    %315 = vmatpush.bf16.xpose.msra.mxu0 0
    %316 = vmatpush.bf16.xpose.msra.mxu0 0
    %317 = vmatpush.bf16.xpose.msra.mxu0 0
    %318 = vmatpush.bf16.xpose.msra.mxu0 0
    %319 = vmatpush.bf16.xpose.msra.mxu0 0
    %320 = vmatpush.bf16.xpose.msra.mxu0 %v311
    %321 = vmatmul.bf16.gmra.mxu0 %v308
    %v322 = vpop.f32.mrf.mxu0
    %v323 = vadd.f32 0.0, %v322
    %v324 = vpop.f32.mrf.mxu0
    %325 = vdwg.mxu0
    %v327 = vunpack.c.l.b16 %v179
    %v328 = vpack.c.b16 %v327, %v327
    %329 = vrot.lane.b32.xlu0 %v328, 112
    %v330 = vpop.permute.xlu0 %329
    %331 = vrot.lane.b32.xlu0 %v273, 112
    %v332 = vpop.permute.xlu0 %331
    %v334 = vsel %vm182, %v330, 0
    %v337 = vsel %vm182, %v332, 0
    %339 = vmatpush.bf16.xpose.msra.mxu0 0
    %340 = vmatpush.bf16.xpose.msra.mxu0 0
    %341 = vmatpush.bf16.xpose.msra.mxu0 0
    %342 = vmatpush.bf16.xpose.msra.mxu0 0
    %343 = vmatpush.bf16.xpose.msra.mxu0 0
    %344 = vmatpush.bf16.xpose.msra.mxu0 0
    %345 = vmatpush.bf16.xpose.msra.mxu0 0
    %346 = vmatpush.bf16.xpose.msra.mxu0 %v337
    %347 = vmatmul.bf16.gmra.mxu0 %v334
    %v348 = vpop.f32.mrf.mxu0
    %v349 = vadd.f32 0.0, %v348
    %v350 = vpop.f32.mrf.mxu0
    %351 = vdwg.mxu0
    %v352 = vsel %vm221, %v323, -inf
    %353 = vmax.xlane.f32.xlu0 %v352
    %v354 = vpop.xlane.xlu0 %353
    %v355 = vsel %vm221, %v349, -inf
    %356 = vmax.xlane.f32.xlu0 %v355
    %v357 = vpop.xlane.xlu0 %356
    %v358 = vsub.f32 %v323, %v354
    %v359 = vsub.f32 %v349, %v357
    %v360 = vmul.f32 %v358, 1.442695
    %v361 = vpow.pop %v360
    %v362 = vmul.f32 %v359, 1.442695
    %v363 = vpow.pop %v362
    %v364 = vsel %vm221, %v361, 0.0
    %365 = vadd.xlane.f32.xlu0 %v364
    %v366 = vpop.xlane.xlu0 %365
    %v367 = vsel %vm221, %v363, 0.0
    %368 = vadd.xlane.f32.xlu0 %v367
    %v369 = vpop.xlane.xlu0 %368
    %v370 = vrcp.pop %v366
    %v371 = vrcp.pop %v369
    %v372 = vmul.f32 %v361, %v370
    %v373 = vmul.f32 %v363, %v371
    %v374 = vpack.c.bf16 %v372, %v372
    %v375 = vpack.c.bf16 %v373, %v373
    %376 = vrot.lane.b32.xlu0 %v248, 80
    %v377 = vpop.permute.xlu0 %376
    %v379 = vsel %vm221, %v374, 0
    %v382 = vsel %vm254, %v377, 0
    %384 = vmatpush.bf16.msra.mxu0 0
    %385 = vmatpush.bf16.msra.mxu0 0
    %386 = vmatpush.bf16.msra.mxu0 0
    %387 = vmatpush.bf16.msra.mxu0 0
    %388 = vmatpush.bf16.msra.mxu0 0
    %389 = vmatpush.bf16.msra.mxu0 0
    %390 = vmatpush.bf16.msra.mxu0 0
    %391 = vmatpush.bf16.msra.mxu0 %v382
    %392 = vmatmul.bf16.gmra.mxu0 %v379
    %v393 = vpop.f32.mrf.mxu0
    %v394 = vadd.f32 0.0, %v393
    %v395 = vpop.f32.mrf.mxu0
    %396 = vdwg.mxu0
    %397 = vrot.lane.b32.xlu0 %v273, 80
    %v398 = vpop.permute.xlu0 %397
    %v400 = vsel %vm221, %v375, 0
    %v403 = vsel %vm254, %v398, 0
    %405 = vmatpush.bf16.msra.mxu0 0
    %406 = vmatpush.bf16.msra.mxu0 0
    %407 = vmatpush.bf16.msra.mxu0 0
    %408 = vmatpush.bf16.msra.mxu0 0
    %409 = vmatpush.bf16.msra.mxu0 0
    %410 = vmatpush.bf16.msra.mxu0 0
    %411 = vmatpush.bf16.msra.mxu0 0
    %412 = vmatpush.bf16.msra.mxu0 %v403
    %413 = vmatmul.bf16.gmra.mxu0 %v400
    %v414 = vpop.f32.mrf.mxu0
    %v415 = vadd.f32 0.0, %v414
    %v416 = vpop.f32.mrf.mxu0
    %417 = vdwg.mxu0
    %v418 = vpack.c.bf16 %v394, %v394
    %v419 = vpack.c.bf16 %v415, %v415
    %422 = vrot.lane.b32.xlu0 %v418, 16
    %v423 = vpop.permute.xlu0 %422
    %424 = vrot.lane.b32.xlu0 %v419, 16
    %v425 = vpop.permute.xlu0 %424
    %vm428 = vcmask 257152
    %429 = vst.msk [vmem:[#allocation2] sm:$0xf] %vm428, %v423
    %430 = vst.msk [vmem:[#allocation2 + $0x4] sm:$0xf] %vm428, %v425
    %v431 = vld [vmem:[#allocation2] sm:$0xf]
    %v432 = vld [vmem:[#allocation2 + $0x4] sm:$0xf]
    %v433 = vld [vmem:[#allocation11] sm:$0xf]
    %v434 = vld [vmem:[#allocation11 + $0x4] sm:$0xf]
    %v435 = vld [vmem:[#allocation11 + $0x8] sm:$0xf]
    %v436 = vld [vmem:[#allocation11 + $0xc] sm:$0xf]
    %v437 = vld [vmem:[%s5] sm:$0x1]
    %v439 = vperm.slane %v437, 0
    %v443 = vunpack.c.l.b16 %v431
    %v444 = vunpack.c.l.b16 %v432
    %v445 = vpack.c.b16 %v444, %v443
    %v450 = vunpack.c.l.b16 %v433
    %v451 = vunpack.c.l.b16 %v434
    %v452 = vunpack.c.l.b16 %v435
    %v453 = vunpack.c.l.b16 %v436
    %v454 = vpack.c.b16 %v451, %v450
    %v455 = vpack.c.b16 %v453, %v452
    %v459 = vsel %vm125, %v445, 0
    %461 = vmatpush.bf16.msra.mxu0 0
    %462 = vmatpush.bf16.msra.mxu0 0
    %463 = vmatpush.bf16.msra.mxu0 0
    %464 = vmatpush.bf16.msra.mxu0 0
    %465 = vmatpush.bf16.msra.mxu0 0
    %466 = vmatpush.bf16.msra.mxu0 0
    %467 = vmatpush.bf16.msra.mxu0 %v455
    %468 = vmatpush.bf16.msra.mxu0 %v454
    %469 = vmatmul.bf16.gmra.mxu0 %v459
    %v470 = vpop.f32.mrf.mxu0
    %v471 = vadd.f32 %v439, %v470
    %v472 = vpop.f32.mrf.mxu0
    %v473 = vadd.f32 %v439, %v472
    %474 = vdwg.mxu0
    %475 = vst.msk [vmem:[#allocation12] sm:$0xff] %vm125, %v471
    %476 = vst.msk [vmem:[#allocation12 + $0x8] sm:$0xff] %vm125, %v473
    // Predicated region
    $region46: #{tpu_custom_call.1} parent=1 // pred_check
      _
    $region47: #{tpu_custom_call.1} parent=1 // pred_check_branch
      %478 = sbr.rel (0) target = $region49
    $region48: #{tpu_custom_call.1} parent=1 // pred_region
      %480 = vsyncadd [#allocation5], 0
      %s481 = sshll.u32 [#allocation12], 4
      %s482 = int_to_ptr.vmem [resolvable:$true] %s481
      %s483 = sshll.u32 %s6, 4
      %s484 = int_to_ptr.hbm [resolvable:$true] %s483
      %489 = dma.vmem_to_hbm [thread:$0]  %s482, 256, %s484, [#allocation5], 128, 128, 8
    $region49: #{tpu_custom_call.1} parent=1 // pred_fallthru
      _
    // Predicated region
    $region50: #{tpu_custom_call.1} parent=1 // pred_check
      _
    $region51: #{tpu_custom_call.1} parent=1 // pred_check_branch
      %491 = sbr.rel (0) target = $region53
    $region52: #{tpu_custom_call.1} parent=1 // pred_region
      %493 = dma.done [#allocation5], 256
    $region53: #{tpu_custom_call.1} parent=1 // pred_fallthru
      _
    %494 = vsyncpa [#allocation4], 1
    %495 = vsyncpa [#allocation7], 1
    %496 = vsyncpa [#allocation10], 1
    %497 = vsyncpa [#allocation5], 1

</llo_original>
